<compile_context>
chip_gen: v7x
topology: tpu7x:2x2x1
jax: 0.10.0
libtpu: 0.0.40
codegen_flags: <defaults>
</compile_context>

<pallas_src>
import functools

import jax
import jax.numpy as jnp
from jax.experimental import pallas as pl
from jax.experimental.pallas import tpu as pltpu


def _lau_kernel(q_ref, ub_ref, aq_ref, aub_ref, ap_ref, b1_ref, w23_ref,
                b23_ref, out_ref):
    # q_ref / ub_ref: (E, Tn) -- flattened rows on lanes (lane-dense).
    q = q_ref[...].astype(jnp.float32)
    ub = ub_ref[...].astype(jnp.float32)

    # fc1 first layer with the concat folded into the weights:
    #   [q, ub, q-ub, q*ub] @ W1 == q@(Wq+Wd) + ub@(Wub-Wd) + (q*ub)@Wp
    h1 = jnp.dot(aq_ref[...], q, preferred_element_type=jnp.float32)
    h1 = h1 + jnp.dot(aub_ref[...], ub, preferred_element_type=jnp.float32)
    h1 = h1 + jnp.dot(ap_ref[...], q * ub, preferred_element_type=jnp.float32)
    h1 = jnp.maximum(h1 + b1_ref[...], 0.0)            # (H1, Tn), ReLU

    # fc1 second layer and fc2 folded (no activation between them):
    #   score = (W2 @ W3)^T . relu(h1) + b23   -- VPU multiply + sublane reduce
    score = jnp.sum(w23_ref[...] * h1, axis=0, keepdims=True) + b23_ref[0]
    out_ref[...] = score.astype(out_ref.dtype)          # (1, Tn) lane-dense store


def _round_up(x, m):
    return (x + m - 1) // m * m


def local_activation_unit(query, user_behavior, params, *, tile_n=1024):
    """query: (B, T, 1, E); user_behavior: (B, T, L, E) -> (B, T, L, 1)."""
    w1, b1, w2, b2, w3, b3 = params
    B, T, one, E = query.shape
    assert one == 1
    L = user_behavior.shape[2]
    in4e, H1 = w1.shape
    assert in4e == 4 * E

    # ---- fold weights at trace time (exact algebra) -------------------------
    wq, wub, wd, wp = w1[0:E], w1[E:2 * E], w1[2 * E:3 * E], w1[3 * E:4 * E]
    aq = (wq + wd).T.astype(jnp.float32)                   # (H1, E)
    aub = (wub - wd).T.astype(jnp.float32)                 # (H1, E)
    ap = wp.T.astype(jnp.float32)                          # (H1, E)
    b1c = b1.reshape(H1, 1).astype(jnp.float32)            # (H1, 1)
    w23 = (w2 @ w3).reshape(H1, 1).astype(jnp.float32)     # (H1, 1) = W2 @ W3
    b23 = (b2 @ w3 + b3).reshape(1).astype(jnp.float32)    # (1,) scalar -> SMEM

    # ---- layout plumbing: rows N = B*T*L on the lane axis --------------------
    N = B * T * L
    q_t = jnp.broadcast_to(query, (B, T, L, E)).reshape(N, E).T   # (E, N)
    ub_t = user_behavior.reshape(N, E).T                          # (E, N)

    if N <= tile_n:
        tile, n_pad = N, N                 # full-dim block: no 128 constraint
    else:
        assert tile_n % 128 == 0, "tile_n must be a multiple of 128"
        tile, n_pad = tile_n, _round_up(N, tile_n)
    if n_pad != N:
        q_t = jnp.pad(q_t, ((0, 0), (0, n_pad - N)))
        ub_t = jnp.pad(ub_t, ((0, 0), (0, n_pad - N)))

    grid = (n_pad // tile,)
    flops = 2 * n_pad * (3 * E * H1 + H1)
    bytes_accessed = 4 * (2 * E + 1) * n_pad + 4 * (3 * H1 * E + 2 * H1 + 1)

    out = pl.pallas_call(
        _lau_kernel,
        out_shape=jax.ShapeDtypeStruct((1, n_pad), jnp.float32),
        grid=grid,
        in_specs=[
            pl.BlockSpec((E, tile), lambda i: (0, i)),          # queries (E,Tn)
            pl.BlockSpec((E, tile), lambda i: (0, i)),          # behavior (E,Tn)
            pl.BlockSpec((H1, E), lambda i: (0, 0)),            # (Wq+Wd)^T resident
            pl.BlockSpec((H1, E), lambda i: (0, 0)),            # (Wub-Wd)^T resident
            pl.BlockSpec((H1, E), lambda i: (0, 0)),            # Wp^T resident
            pl.BlockSpec((H1, 1), lambda i: (0, 0)),            # b1 resident
            pl.BlockSpec((H1, 1), lambda i: (0, 0)),            # W2@W3 resident
            pl.BlockSpec(memory_space=pltpu.MemorySpace.SMEM),  # b23 scalar
        ],
        out_specs=pl.BlockSpec((1, tile), lambda i: (0, i)),
        compiler_params=pltpu.CompilerParams(
            dimension_semantics=("parallel",)),
        cost_estimate=pl.CostEstimate(
            flops=flops, transcendentals=0, bytes_accessed=bytes_accessed),
    )(q_t, ub_t, aq, aub, ap, b1c, w23, b23)

    return out[0, :N].reshape(B, T, L, 1)


def init_params(key, embedding_dim=4, hidden_unit=(80, 40)):
    """Deterministic synthetic init mimicking PyTorch nn.Linear default (U(-k, k))."""
    in_size = 4 * embedding_dim
    dims = [in_size, hidden_unit[0], hidden_unit[1], 1]
    params = []
    for idx in range(3):
        fan_in, fan_out = dims[idx], dims[idx + 1]
        k = 1.0 / jnp.sqrt(jnp.float32(fan_in))
        key, kw, kb = jax.random.split(key, 3)
        w = jax.random.uniform(kw, (fan_in, fan_out), jnp.float32, -k, k)
        b = jax.random.uniform(kb, (1, fan_out), jnp.float32, -k, k)
        params.extend([w, b])
    return tuple(params)


def _reference(query, user_behavior, params):
    w1, b1, w2, b2, w3, b3 = params
    B, T, _, E = query.shape
    L = user_behavior.shape[2]
    q = jnp.broadcast_to(query, (B, T, L, E))
    x = jnp.concatenate([q, user_behavior, q - user_behavior, q * user_behavior],
                        axis=-1)
    h1 = jnp.maximum(x @ w1 + b1[0], 0.0)
    h2 = h1 @ w2 + b2[0]
    return h2 @ w3 + b3[0]


if __name__ == "__main__":
    key = jax.random.PRNGKey(0)
    kq, kub, kp = jax.random.split(key, 3)

    B, T, L, E = 2, 2, 8, 4
    hidden_unit = (80, 40)

    query = jax.random.normal(kq, (B, T, 1, E), jnp.float32)
    user_behavior = jax.random.normal(kub, (B, T, L, E), jnp.float32)
    params = init_params(kp, embedding_dim=E, hidden_unit=hidden_unit)

    lau = jax.jit(functools.partial(local_activation_unit, tile_n=1024))
    score = jax.block_until_ready(lau(query, user_behavior, params))

    ref = _reference(query, user_behavior, params)
    assert score.shape == (B, T, L, 1), score.shape
    assert jnp.allclose(score, ref, atol=2e-4, rtol=2e-4), "mismatch vs reference"

    print("KERNEL_OK")
</pallas_src>

<mosaic_0001>
module attributes {stable_mosaic.version = 11 : i64} {
  func.func @_lau_kernel(%arg0: i32, %arg1: memref<4x32xf32, #tpu.memory_space<vmem>>, %arg2: memref<4x32xf32, #tpu.memory_space<vmem>>, %arg3: memref<80x4xf32, #tpu.memory_space<vmem>>, %arg4: memref<80x4xf32, #tpu.memory_space<vmem>>, %arg5: memref<80x4xf32, #tpu.memory_space<vmem>>, %arg6: memref<80x1xf32, #tpu.memory_space<vmem>>, %arg7: memref<80x1xf32, #tpu.memory_space<vmem>>, %arg8: memref<1xf32, #tpu.memory_space<smem>>, %arg9: memref<1x32xf32, #tpu.memory_space<vmem>>) attributes {dimension_semantics = [#tpu.dimension_semantics<parallel>], iteration_bounds = array<i64: 1>, scalar_prefetch = 0 : i64, scratch_operands = 0 : i64, tpu.core_type = #tpu.core_type<tc>, window_params = [{transform_indices = @transform_0, window_bounds = array<i64: 4, 32>}, {transform_indices = @transform_1, window_bounds = array<i64: 4, 32>}, {pipeline_mode = #tpu.pipeline_mode<synchronous>, transform_indices = @transform_2, window_bounds = array<i64: 80, 4>}, {pipeline_mode = #tpu.pipeline_mode<synchronous>, transform_indices = @transform_3, window_bounds = array<i64: 80, 4>}, {pipeline_mode = #tpu.pipeline_mode<synchronous>, transform_indices = @transform_4, window_bounds = array<i64: 80, 4>}, {pipeline_mode = #tpu.pipeline_mode<synchronous>, transform_indices = @transform_5, window_bounds = array<i64: 80, 1>}, {pipeline_mode = #tpu.pipeline_mode<synchronous>, transform_indices = @transform_6, window_bounds = array<i64: 80, 1>}, {transform_indices = @transform_7, window_bounds = array<i64: 1>}, {transform_indices = @transform_8, window_bounds = array<i64: 1, 32>}]} {
    %c0 = arith.constant 0 : index
    %c0_0 = arith.constant 0 : index
    %0 = vector.load %arg1[%c0, %c0_0] : memref<4x32xf32, #tpu.memory_space<vmem>>, vector<4x32xf32>
    %c0_1 = arith.constant 0 : index
    %c0_2 = arith.constant 0 : index
    %1 = vector.load %arg2[%c0_1, %c0_2] : memref<4x32xf32, #tpu.memory_space<vmem>>, vector<4x32xf32>
    %c0_3 = arith.constant 0 : index
    %c0_4 = arith.constant 0 : index
    %2 = vector.load %arg3[%c0_3, %c0_4] : memref<80x4xf32, #tpu.memory_space<vmem>>, vector<80x4xf32>
    %cst = arith.constant dense<0.000000e+00> : vector<80x32xf32>
    %3 = tpu.matmul %2, %0, %cst {dimension_numbers = #tpu.dot_dimension_numbers<[1], [0], [0], [1], [0, 0, 1, 1], [], []>} : vector<80x4xf32>, vector<4x32xf32>, vector<80x32xf32> -> vector<80x32xf32>
    %c0_5 = arith.constant 0 : index
    %c0_6 = arith.constant 0 : index
    %4 = vector.load %arg4[%c0_5, %c0_6] : memref<80x4xf32, #tpu.memory_space<vmem>>, vector<80x4xf32>
    %cst_7 = arith.constant dense<0.000000e+00> : vector<80x32xf32>
    %5 = tpu.matmul %4, %1, %cst_7 {dimension_numbers = #tpu.dot_dimension_numbers<[1], [0], [0], [1], [0, 0, 1, 1], [], []>} : vector<80x4xf32>, vector<4x32xf32>, vector<80x32xf32> -> vector<80x32xf32>
    %6 = arith.addf %3, %5 : vector<80x32xf32>
    %c0_8 = arith.constant 0 : index
    %c0_9 = arith.constant 0 : index
    %7 = vector.load %arg5[%c0_8, %c0_9] : memref<80x4xf32, #tpu.memory_space<vmem>>, vector<80x4xf32>
    %8 = arith.mulf %0, %1 : vector<4x32xf32>
    %cst_10 = arith.constant dense<0.000000e+00> : vector<80x32xf32>
    %9 = tpu.matmul %7, %8, %cst_10 {dimension_numbers = #tpu.dot_dimension_numbers<[1], [0], [0], [1], [0, 0, 1, 1], [], []>} : vector<80x4xf32>, vector<4x32xf32>, vector<80x32xf32> -> vector<80x32xf32>
    %10 = arith.addf %6, %9 : vector<80x32xf32>
    %c0_11 = arith.constant 0 : index
    %c0_12 = arith.constant 0 : index
    %11 = vector.load %arg6[%c0_11, %c0_12] : memref<80x1xf32, #tpu.memory_space<vmem>>, vector<80x1xf32>
    %12 = vector.broadcast %11 : vector<80x1xf32> to vector<80x32xf32>
    %13 = arith.addf %10, %12 : vector<80x32xf32>
    %cst_13 = arith.constant 0.000000e+00 : f32
    %14 = vector.broadcast %cst_13 : f32 to vector<80x32xf32>
    %15 = arith.maximumf %13, %14 : vector<80x32xf32>
    %c0_14 = arith.constant 0 : index
    %c0_15 = arith.constant 0 : index
    %16 = vector.load %arg7[%c0_14, %c0_15] : memref<80x1xf32, #tpu.memory_space<vmem>>, vector<80x1xf32>
    %17 = vector.broadcast %16 : vector<80x1xf32> to vector<80x32xf32>
    %18 = arith.mulf %17, %15 : vector<80x32xf32>
    %cst_16 = arith.constant dense<0.000000e+00> : vector<32xf32>
    %19 = vector.multi_reduction <add>, %18, %cst_16 [0] : vector<80x32xf32> to vector<32xf32>
    %20 = vector.shape_cast %19 : vector<32xf32> to vector<1x32xf32>
    %c0_17 = arith.constant 0 : index
    %21 = memref.load %arg8[%c0_17] : memref<1xf32, #tpu.memory_space<smem>>
    %22 = vector.broadcast %21 : f32 to vector<1x32xf32>
    %23 = arith.addf %20, %22 : vector<1x32xf32>
    %c0_18 = arith.constant 0 : index
    %c0_19 = arith.constant 0 : index
    %24 = vector.load %arg9[%c0_18, %c0_19] : memref<1x32xf32, #tpu.memory_space<vmem>>, vector<1x32xf32>
    tpu.vector_store %arg9[%c0_18, %c0_19], %23 {strides = array<i32>} : memref<1x32xf32, #tpu.memory_space<vmem>>, vector<1x32xf32>,
    return
  }
  func.func @transform_0(%arg0: i32) -> (i32, i32) {
    %c0_i32 = arith.constant 0 : i32
    %c0_i32_0 = arith.constant 0 : i32
    return %c0_i32, %arg0 : i32, i32
  }
  func.func @transform_1(%arg0: i32) -> (i32, i32) {
    %c0_i32 = arith.constant 0 : i32
    %c0_i32_0 = arith.constant 0 : i32
    return %c0_i32, %arg0 : i32, i32
  }
  func.func @transform_2(%arg0: i32) -> (i32, i32) {
    %c0_i32 = arith.constant 0 : i32
    %c0_i32_0 = arith.constant 0 : i32
    %c0_i32_1 = arith.constant 0 : i32
    return %c0_i32, %c0_i32_0 : i32, i32
  }
  func.func @transform_3(%arg0: i32) -> (i32, i32) {
    %c0_i32 = arith.constant 0 : i32
    %c0_i32_0 = arith.constant 0 : i32
    %c0_i32_1 = arith.constant 0 : i32
    return %c0_i32, %c0_i32_0 : i32, i32
  }
  func.func @transform_4(%arg0: i32) -> (i32, i32) {
    %c0_i32 = arith.constant 0 : i32
    %c0_i32_0 = arith.constant 0 : i32
    %c0_i32_1 = arith.constant 0 : i32
    return %c0_i32, %c0_i32_0 : i32, i32
  }
  func.func @transform_5(%arg0: i32) -> (i32, i32) {
    %c0_i32 = arith.constant 0 : i32
    %c0_i32_0 = arith.constant 0 : i32
    %c0_i32_1 = arith.constant 0 : i32
    return %c0_i32, %c0_i32_0 : i32, i32
  }
  func.func @transform_6(%arg0: i32) -> (i32, i32) {
    %c0_i32 = arith.constant 0 : i32
    %c0_i32_0 = arith.constant 0 : i32
    %c0_i32_1 = arith.constant 0 : i32
    return %c0_i32, %c0_i32_0 : i32, i32
  }
  func.func @transform_7(%arg0: i32) -> i32 {
    %c0_i32 = arith.constant 0 : i32
    %c0_i32_0 = arith.constant 0 : i32
    return %c0_i32 : i32
  }
  func.func @transform_8(%arg0: i32) -> (i32, i32) {
    %c0_i32 = arith.constant 0 : i32
    %c0_i32_0 = arith.constant 0 : i32
    return %c0_i32, %arg0 : i32, i32
  }
}

</mosaic_0001>

<llo_original>
// kernel: squeeze.1
$region0: #{squeeze.1}
  %s0 = inlined_call_operand.vmem [shape: f32[32], index: 0, kind: input, shape index: {}]
  %s1 = inlined_call_operand.hbm [shape: f32[2,2,8,1], index: 1, kind: output, shape index: {}]
  $region1: #{squeeze.1} parent=0
    #allocation0 [shape = 'u8[2048]{0}', space=vmem, size = 0x800, scoped, tag = 'operand span for operand 1']
    #allocation1 [shape = 's32[1]{0}', space=sflag, size = 0x4, scoped, tag = 'scoped memory for squeeze.1']
    #allocation2 [shape = 'u8[8192]{0}', space=vmem, size = 0x2000, scoped, tag = 'scoped mem for output reshape']
    #allocation3 [shape = 'u8[4096]{0}', space=vmem, size = 0x1000, scoped, tag = 'scoped mem for input reshape']
    %2 = vsyncpa [#allocation1], 0
    %s4 = sshllo.u32 0, 1
    %v5 = vld [vmem:[%s0] sm:%s4]
    %6 = vst [vmem:[#allocation3] sm:%s4] %v5
    %v7 = vld [vmem:[#allocation3] sm:$0x1]
    %vm8 = vcmask 64512
    %9 = vst.msk [vmem:[#allocation2] sm:$0x1] %vm8, %v7
    %v10 = vld [vmem:[#allocation3] sm:$0x1]
    %11 = vrot.lane.b32.xlu0 %v10, 120
    %v12 = vpop.permute.xlu0 %11
    %vm13 = vcmask 64512
    %s14 = scalar_lea.vmem [#allocation2], 1
    %15 = vst.msk [vmem:[%s14] sm:$0x1] %vm13, %v12
    %v16 = vld [vmem:[#allocation3] sm:$0x1]
    %17 = vrot.lane.b32.xlu0 %v16, 112
    %v18 = vpop.permute.xlu0 %17
    %vm19 = vcmask 64512
    %s20 = scalar_lea.vmem [#allocation2], 8
    %21 = vst.msk [vmem:[%s20] sm:$0x1] %vm19, %v18
    %v22 = vld [vmem:[#allocation3] sm:$0x1]
    %23 = vrot.lane.b32.xlu0 %v22, 104
    %v24 = vpop.permute.xlu0 %23
    %vm25 = vcmask 64512
    %s26 = scalar_lea.vmem [#allocation2], 9
    %27 = vst.msk [vmem:[%s26] sm:$0x1] %vm25, %v24
    %s29 = sshllo.u32 0, 2
    %v31 = vld [vmem:[#allocation2] sm:%s29]
    %s32 = sshllo.u32 0, 2
    %33 = vst [vmem:[#allocation0] sm:%s32] %v31
    %s34 = scalar_lea.vmem [#allocation2], 8
    %v35 = vld [vmem:[%s34] sm:%s29]
    %s36 = sshllo.u32 0, 2
    %s37 = scalar_lea.vmem [#allocation0], 2
    %38 = vst [vmem:[%s37] sm:%s36] %v35
    %s40 = ssub.s32 64, 64
    %41 = vsyncadd [#allocation1], %s40
    %s43 = sshll.u32 [#allocation0], 4
    %s44 = int_to_ptr.vmem [resolvable:$true] %s43
    %46 = dma.vmem_to_hbm [thread:$0]  %s44, 64, %s1, [#allocation1]
    %47 = dma.done [#allocation1], 64
    %48 = vsyncpa [#allocation1], 1

// kernel: local_activation_unit.1
$region0: #{local_activation_unit.1}
  #allocation0 [shape = 'u32[]', space=smem, size = 0x4, offset = 0x4, fixed_abs, tag = 'smem constant byte address 0x4 - core index']
  #allocation1 [shape = 'u32[144,128]{1,0:T(1,128)}', space=vmem, size = 0x12000, scoped, tag = 'internal scratch']
  #allocation2 [shape = 'f32[1]{0:T(128)S(6)}', space=smem, size = 0x200, scoped, tag = 'scoped memory for local_activation_unit.1']
  %s0 = inlined_call_operand.vmem [shape: f32[4,32], index: 0, kind: input, shape index: {}]
  %s1 = inlined_call_operand.vmem [shape: f32[4,32], index: 1, kind: input, shape index: {}]
  %s2 = inlined_call_operand.vmem [shape: f32[80,4], index: 2, kind: input, shape index: {}]
  %s3 = inlined_call_operand.vmem [shape: f32[80,4], index: 3, kind: input, shape index: {}]
  %s4 = inlined_call_operand.vmem [shape: f32[80,4], index: 4, kind: input, shape index: {}]
  %s5 = inlined_call_operand.vmem [shape: f32[80,1], index: 5, kind: input, shape index: {}]
  %s6 = inlined_call_operand.vmem [shape: f32[80,1], index: 6, kind: input, shape index: {}]
  %s7 = inlined_call_operand.<no memory space> [shape: f32[1], index: 7, kind: input, shape index: {}]
  %s8 = inlined_call_operand.vmem [shape: f32[1,32], index: 8, kind: output, shape index: {}]
  %s9 = sld [smem:[#allocation0]]
  $region42: #{local_activation_unit.1} parent=0
    _
  %s11 = ssub.s32 1, %s9
  %s12 = scalar_select 0, %s11, %s9
  %13 = sst [smem:[#allocation2]] %s7
  // Predicated region
  $region2: #{local_activation_unit.1} parent=0 // pred_check
    _
  $region3: #{local_activation_unit.1} parent=0 // pred_check_branch
    %15 = sbr.rel (0) target = $region5
  $region4: #{local_activation_unit.1} parent=0 // pred_region
    _
  $region5: #{local_activation_unit.1} parent=0 // pred_fallthru
    _
  // Predicated region
  $region6: #{local_activation_unit.1} parent=0 // pred_check
    _
  $region7: #{local_activation_unit.1} parent=0 // pred_check_branch
    %17 = sbr.rel (0) target = $region9
  $region8: #{local_activation_unit.1} parent=0 // pred_region
    _
  $region9: #{local_activation_unit.1} parent=0 // pred_fallthru
    _
  // Predicated region
  $region10: #{local_activation_unit.1} parent=0 // pred_check
    _
  $region11: #{local_activation_unit.1} parent=0 // pred_check_branch
    %19 = sbr.rel (0) target = $region13
  $region12: #{local_activation_unit.1} parent=0 // pred_region
    _
  $region13: #{local_activation_unit.1} parent=0 // pred_fallthru
    _
  // Predicated region
  $region14: #{local_activation_unit.1} parent=0 // pred_check
    _
  $region15: #{local_activation_unit.1} parent=0 // pred_check_branch
    %21 = sbr.rel (0) target = $region17
  $region16: #{local_activation_unit.1} parent=0 // pred_region
    _
  $region17: #{local_activation_unit.1} parent=0 // pred_fallthru
    _
  // Predicated region
  $region18: #{local_activation_unit.1} parent=0 // pred_check
    _
  $region19: #{local_activation_unit.1} parent=0 // pred_check_branch
    %23 = sbr.rel (0) target = $region21
  $region20: #{local_activation_unit.1} parent=0 // pred_region
    _
  $region21: #{local_activation_unit.1} parent=0 // pred_fallthru
    _
  // Predicated region
  $region22: #{local_activation_unit.1} parent=0 // pred_check
    _
  $region23: #{local_activation_unit.1} parent=0 // pred_check_branch
    %25 = sbr.rel (0) target = $region25
  $region24: #{local_activation_unit.1} parent=0 // pred_region
    _
  $region25: #{local_activation_unit.1} parent=0 // pred_fallthru
    _
  // Predicated region
  $region26: #{local_activation_unit.1} parent=0 // pred_check
    _
  $region27: #{local_activation_unit.1} parent=0 // pred_check_branch
    %27 = sbr.rel (0) target = $region29
  $region28: #{local_activation_unit.1} parent=0 // pred_region
    _
  $region29: #{local_activation_unit.1} parent=0 // pred_fallthru
    _
  // Predicated region
  $region30: #{local_activation_unit.1} parent=0 // pred_check
    _
  $region31: #{local_activation_unit.1} parent=0 // pred_check_branch
    %29 = sbr.rel (0) target = $region33
  $region32: #{local_activation_unit.1} parent=0 // pred_region
    _
  $region33: #{local_activation_unit.1} parent=0 // pred_fallthru
    _
  %v30 = vld [vmem:[%s0] sm:$0xf]
  %v31 = vld [vmem:[%s1] sm:$0xf]
  %v32 = vld [vmem:[%s2] sm:$0xff]
  %v33 = vld [vmem:[%s2 + $0x8] sm:$0xff]
  %v34 = vld [vmem:[%s2 + $0x10] sm:$0xff]
  %v35 = vld [vmem:[%s2 + $0x18] sm:$0xff]
  %v36 = vld [vmem:[%s2 + $0x20] sm:$0xff]
  %v37 = vld [vmem:[%s2 + $0x28] sm:$0xff]
  %v38 = vld [vmem:[%s2 + $0x30] sm:$0xff]
  %v39 = vld [vmem:[%s2 + $0x38] sm:$0xff]
  %v40 = vld [vmem:[%s2 + $0x40] sm:$0xff]
  %v41 = vld [vmem:[%s2 + $0x48] sm:$0xff]
  %v42 = vld [vmem:[%s3] sm:$0xff]
  %v43 = vld [vmem:[%s3 + $0x8] sm:$0xff]
  %v44 = vld [vmem:[%s3 + $0x10] sm:$0xff]
  %v45 = vld [vmem:[%s3 + $0x18] sm:$0xff]
  %v46 = vld [vmem:[%s3 + $0x20] sm:$0xff]
  %v47 = vld [vmem:[%s3 + $0x28] sm:$0xff]
  %v48 = vld [vmem:[%s3 + $0x30] sm:$0xff]
  %v49 = vld [vmem:[%s3 + $0x38] sm:$0xff]
  %v50 = vld [vmem:[%s3 + $0x40] sm:$0xff]
  %v51 = vld [vmem:[%s3 + $0x48] sm:$0xff]
  %vm52 = vcmask 31744
  %v54 = vsel %vm52, %v42, 0
  %v57 = vsel %vm52, %v43, 0
  %v60 = vsel %vm52, %v44, 0
  %v63 = vsel %vm52, %v45, 0
  %v66 = vsel %vm52, %v46, 0
  %v69 = vsel %vm52, %v47, 0
  %v72 = vsel %vm52, %v48, 0
  %v75 = vsel %vm52, %v49, 0
  %v78 = vsel %vm52, %v50, 0
  %v81 = vsel %vm52, %v51, 0
  %vm83 = vcmask 1043456
  %v85 = vsel %vm83, %v31, 0
  %87 = vmatprep.subr.mxu0 0.0
  %88 = vmatpush1.msra.mxu0 %v85
  %89 = vmatprep.subr.mxu0 0.0
  %90 = vmatpush1.msra.mxu0 0.0
  %91 = vmatprep.subr.mxu0 0.0
  %92 = vmatpush1.msra.mxu0 0.0
  %93 = vmatprep.subr.mxu0 0.0
  %94 = vmatpush1.msra.mxu0 0.0
  %95 = vmatprep.subr.mxu0 0.0
  %96 = vmatpush1.msra.mxu0 0.0
  %97 = vmatprep.subr.mxu0 0.0
  %98 = vmatpush1.msra.mxu0 0.0
  %99 = vmatprep.subr.mxu0 0.0
  %100 = vmatpush1.msra.mxu0 0.0
  %101 = vmatprep.subr.mxu0 0.0
  %102 = vmatpush1.msra.mxu0 0.0
  %103 = vmatprep.subr.mxu0 0.0
  %104 = vmatpush1.msra.mxu0 0.0
  %105 = vmatprep.subr.mxu0 0.0
  %106 = vmatpush1.msra.mxu0 0.0
  %107 = vmatprep.subr.mxu0 0.0
  %108 = vmatpush1.msra.mxu0 0.0
  %109 = vmatprep.subr.mxu0 0.0
  %110 = vmatpush1.msra.mxu0 0.0
  %111 = vmatprep.subr.mxu0 0.0
  %112 = vmatpush1.msra.mxu0 0.0
  %113 = vmatprep.subr.mxu0 0.0
  %114 = vmatpush1.msra.mxu0 0.0
  %115 = vmatprep.subr.mxu0 0.0
  %116 = vmatpush1.msra.mxu0 0.0
  %117 = vmatprep.subr.mxu0 0.0
  %118 = vmatpush1.msra.mxu0 0.0
  %119 = vmatprep.subr.mxu0 0.0
  %120 = vmatpush1.msra.mxu0 0.0
  %121 = vmatprep.subr.mxu0 0.0
  %122 = vmatpush1.msra.mxu0 0.0
  %123 = vmatprep.subr.mxu0 0.0
  %124 = vmatpush1.msra.mxu0 0.0
  %125 = vmatprep.subr.mxu0 0.0
  %126 = vmatpush1.msra.mxu0 0.0
  %127 = vmatprep.subr.mxu0 0.0
  %128 = vmatpush1.msra.mxu0 0.0
  %129 = vmatprep.subr.mxu0 0.0
  %130 = vmatpush1.msra.mxu0 0.0
  %131 = vmatprep.subr.mxu0 0.0
  %132 = vmatpush1.msra.mxu0 0.0
  %133 = vmatprep.subr.mxu0 0.0
  %134 = vmatpush1.msra.mxu0 0.0
  %135 = vmatprep.subr.mxu0 0.0
  %136 = vmatpush1.msra.mxu0 0.0
  %137 = vmatprep.subr.mxu0 0.0
  %138 = vmatpush1.msra.mxu0 0.0
  %139 = vmatprep.subr.mxu0 0.0
  %140 = vmatpush1.msra.mxu0 0.0
  %141 = vmatprep.subr.mxu0 0.0
  %142 = vmatpush1.msra.mxu0 0.0
  %143 = vmatprep.subr.mxu0 0.0
  %144 = vmatpush1.msra.mxu0 0.0
  %145 = vmatprep.subr.mxu0 0.0
  %146 = vmatpush1.msra.mxu0 0.0
  %147 = vmatprep.subr.mxu0 0.0
  %148 = vmatpush1.msra.mxu0 0.0
  %149 = vmatprep.subr.mxu0 0.0
  %150 = vmatpush1.msra.mxu0 0.0
  %151 = vmatprep.mubr.f32.mxu0 0.0
  %152 = vmatmul.mubr.f32.gmra.mrb[0].mxu0 %v54
  %v153 = vpop.f32.mrb[0].mxu0
  %v154 = vadd.f32 0.0, %v153
  %v155 = vpop.f32.mrb[0].mxu0
  %156 = vmatprep.mubr.f32.mxu0 0.0
  %157 = vmatmul.mubr.f32.gmra.mrb[0].mxu0 %v57
  %v158 = vpop.f32.mrb[0].mxu0
  %v159 = vadd.f32 0.0, %v158
  %v160 = vpop.f32.mrb[0].mxu0
  %161 = vmatprep.mubr.f32.mxu0 0.0
  %162 = vmatmul.mubr.f32.gmra.mrb[0].mxu0 %v60
  %v163 = vpop.f32.mrb[0].mxu0
  %v164 = vadd.f32 0.0, %v163
  %v165 = vpop.f32.mrb[0].mxu0
  %166 = vmatprep.mubr.f32.mxu0 0.0
  %167 = vmatmul.mubr.f32.gmra.mrb[0].mxu0 %v63
  %v168 = vpop.f32.mrb[0].mxu0
  %v169 = vadd.f32 0.0, %v168
  %v170 = vpop.f32.mrb[0].mxu0
  %171 = vmatprep.mubr.f32.mxu0 0.0
  %172 = vmatmul.mubr.f32.gmra.mrb[0].mxu0 %v66
  %v173 = vpop.f32.mrb[0].mxu0
  %v174 = vadd.f32 0.0, %v173
  %v175 = vpop.f32.mrb[0].mxu0
  %176 = vmatprep.mubr.f32.mxu0 0.0
  %177 = vmatmul.mubr.f32.gmra.mrb[0].mxu0 %v69
  %v178 = vpop.f32.mrb[0].mxu0
  %v179 = vadd.f32 0.0, %v178
  %v180 = vpop.f32.mrb[0].mxu0
  %181 = vmatprep.mubr.f32.mxu0 0.0
  %182 = vmatmul.mubr.f32.gmra.mrb[0].mxu0 %v72
  %v183 = vpop.f32.mrb[0].mxu0
  %v184 = vadd.f32 0.0, %v183
  %v185 = vpop.f32.mrb[0].mxu0
  %186 = vmatprep.mubr.f32.mxu0 0.0
  %187 = vmatmul.mubr.f32.gmra.mrb[0].mxu0 %v75
  %v188 = vpop.f32.mrb[0].mxu0
  %v189 = vadd.f32 0.0, %v188
  %v190 = vpop.f32.mrb[0].mxu0
  %191 = vmatprep.mubr.f32.mxu0 0.0
  %192 = vmatmul.mubr.f32.gmra.mrb[0].mxu0 %v78
  %v193 = vpop.f32.mrb[0].mxu0
  %v194 = vadd.f32 0.0, %v193
  %v195 = vpop.f32.mrb[0].mxu0
  %196 = vmatprep.mubr.f32.mxu0 0.0
  %197 = vmatmul.mubr.f32.gmra.mrb[0].mxu0 %v81
  %v198 = vpop.f32.mrb[0].mxu0
  %v199 = vadd.f32 0.0, %v198
  %v200 = vpop.f32.mrb[0].mxu0
  %201 = vdwg.mxu0
  %v203 = vsel %vm52, %v32, 0
  %v206 = vsel %vm52, %v33, 0
  %v209 = vsel %vm52, %v34, 0
  %v212 = vsel %vm52, %v35, 0
  %v215 = vsel %vm52, %v36, 0
  %v218 = vsel %vm52, %v37, 0
  %v221 = vsel %vm52, %v38, 0
  %v224 = vsel %vm52, %v39, 0
  %v227 = vsel %vm52, %v40, 0
  %v230 = vsel %vm52, %v41, 0
  %v233 = vsel %vm83, %v30, 0
  %235 = vmatprep.subr.mxu0 0.0
  %236 = vmatpush1.msra.mxu0 %v233
  %237 = vmatprep.subr.mxu0 0.0
  %238 = vmatpush1.msra.mxu0 0.0
  %239 = vmatprep.subr.mxu0 0.0
  %240 = vmatpush1.msra.mxu0 0.0
  %241 = vmatprep.subr.mxu0 0.0
  %242 = vmatpush1.msra.mxu0 0.0
  %243 = vmatprep.subr.mxu0 0.0
  %244 = vmatpush1.msra.mxu0 0.0
  %245 = vmatprep.subr.mxu0 0.0
  %246 = vmatpush1.msra.mxu0 0.0
  %247 = vmatprep.subr.mxu0 0.0
  %248 = vmatpush1.msra.mxu0 0.0
  %249 = vmatprep.subr.mxu0 0.0
  %250 = vmatpush1.msra.mxu0 0.0
  %251 = vmatprep.subr.mxu0 0.0
  %252 = vmatpush1.msra.mxu0 0.0
  %253 = vmatprep.subr.mxu0 0.0
  %254 = vmatpush1.msra.mxu0 0.0
  %255 = vmatprep.subr.mxu0 0.0
  %256 = vmatpush1.msra.mxu0 0.0
  %257 = vmatprep.subr.mxu0 0.0
  %258 = vmatpush1.msra.mxu0 0.0
  %259 = vmatprep.subr.mxu0 0.0
  %260 = vmatpush1.msra.mxu0 0.0
  %261 = vmatprep.subr.mxu0 0.0
  %262 = vmatpush1.msra.mxu0 0.0
  %263 = vmatprep.subr.mxu0 0.0
  %264 = vmatpush1.msra.mxu0 0.0
  %265 = vmatprep.subr.mxu0 0.0
  %266 = vmatpush1.msra.mxu0 0.0
  %267 = vmatprep.subr.mxu0 0.0
  %268 = vmatpush1.msra.mxu0 0.0
  %269 = vmatprep.subr.mxu0 0.0
  %270 = vmatpush1.msra.mxu0 0.0
  %271 = vmatprep.subr.mxu0 0.0
  %272 = vmatpush1.msra.mxu0 0.0
  %273 = vmatprep.subr.mxu0 0.0
  %274 = vmatpush1.msra.mxu0 0.0
  %275 = vmatprep.subr.mxu0 0.0
  %276 = vmatpush1.msra.mxu0 0.0
  %277 = vmatprep.subr.mxu0 0.0
  %278 = vmatpush1.msra.mxu0 0.0
  %279 = vmatprep.subr.mxu0 0.0
  %280 = vmatpush1.msra.mxu0 0.0
  %281 = vmatprep.subr.mxu0 0.0
  %282 = vmatpush1.msra.mxu0 0.0
  %283 = vmatprep.subr.mxu0 0.0
  %284 = vmatpush1.msra.mxu0 0.0
  %285 = vmatprep.subr.mxu0 0.0
  %286 = vmatpush1.msra.mxu0 0.0
  %287 = vmatprep.subr.mxu0 0.0
  %288 = vmatpush1.msra.mxu0 0.0
  %289 = vmatprep.subr.mxu0 0.0
  %290 = vmatpush1.msra.mxu0 0.0
  %291 = vmatprep.subr.mxu0 0.0
  %292 = vmatpush1.msra.mxu0 0.0
  %293 = vmatprep.subr.mxu0 0.0
  %294 = vmatpush1.msra.mxu0 0.0
  %295 = vmatprep.subr.mxu0 0.0
  %296 = vmatpush1.msra.mxu0 0.0
  %297 = vmatprep.subr.mxu0 0.0
  %298 = vmatpush1.msra.mxu0 0.0
  %299 = vmatprep.mubr.f32.mxu0 0.0
  %300 = vmatmul.mubr.f32.gmra.mrb[0].mxu0 %v203
  %v301 = vpop.f32.mrb[0].mxu0
  %v302 = vadd.f32 %v154, %v301
  %v303 = vpop.f32.mrb[0].mxu0
  %304 = vmatprep.mubr.f32.mxu0 0.0
  %305 = vmatmul.mubr.f32.gmra.mrb[0].mxu0 %v206
  %v306 = vpop.f32.mrb[0].mxu0
  %v307 = vadd.f32 %v159, %v306
  %v308 = vpop.f32.mrb[0].mxu0
  %309 = vmatprep.mubr.f32.mxu0 0.0
  %310 = vmatmul.mubr.f32.gmra.mrb[0].mxu0 %v209
  %v311 = vpop.f32.mrb[0].mxu0
  %v312 = vadd.f32 %v164, %v311
  %v313 = vpop.f32.mrb[0].mxu0
  %314 = vmatprep.mubr.f32.mxu0 0.0
  %315 = vmatmul.mubr.f32.gmra.mrb[0].mxu0 %v212
  %v316 = vpop.f32.mrb[0].mxu0
  %v317 = vadd.f32 %v169, %v316
  %v318 = vpop.f32.mrb[0].mxu0
  %319 = vmatprep.mubr.f32.mxu0 0.0
  %320 = vmatmul.mubr.f32.gmra.mrb[0].mxu0 %v215
  %v321 = vpop.f32.mrb[0].mxu0
  %v322 = vadd.f32 %v174, %v321
  %v323 = vpop.f32.mrb[0].mxu0
  %324 = vmatprep.mubr.f32.mxu0 0.0
  %325 = vmatmul.mubr.f32.gmra.mrb[0].mxu0 %v218
  %v326 = vpop.f32.mrb[0].mxu0
  %v327 = vadd.f32 %v179, %v326
  %v328 = vpop.f32.mrb[0].mxu0
  %329 = vmatprep.mubr.f32.mxu0 0.0
  %330 = vmatmul.mubr.f32.gmra.mrb[0].mxu0 %v221
  %v331 = vpop.f32.mrb[0].mxu0
  %v332 = vadd.f32 %v184, %v331
  %v333 = vpop.f32.mrb[0].mxu0
  %334 = vmatprep.mubr.f32.mxu0 0.0
  %335 = vmatmul.mubr.f32.gmra.mrb[0].mxu0 %v224
  %v336 = vpop.f32.mrb[0].mxu0
  %v337 = vadd.f32 %v189, %v336
  %v338 = vpop.f32.mrb[0].mxu0
  %339 = vmatprep.mubr.f32.mxu0 0.0
  %340 = vmatmul.mubr.f32.gmra.mrb[0].mxu0 %v227
  %v341 = vpop.f32.mrb[0].mxu0
  %v342 = vadd.f32 %v194, %v341
  %v343 = vpop.f32.mrb[0].mxu0
  %344 = vmatprep.mubr.f32.mxu0 0.0
  %345 = vmatmul.mubr.f32.gmra.mrb[0].mxu0 %v230
  %v346 = vpop.f32.mrb[0].mxu0
  %v347 = vadd.f32 %v199, %v346
  %v348 = vpop.f32.mrb[0].mxu0
  %349 = vdwg.mxu0
  %v350 = vld [vmem:[%s4] sm:$0xff]
  %v351 = vld [vmem:[%s4 + $0x8] sm:$0xff]
  %v352 = vld [vmem:[%s4 + $0x10] sm:$0xff]
  %v353 = vld [vmem:[%s4 + $0x18] sm:$0xff]
  %v354 = vld [vmem:[%s4 + $0x20] sm:$0xff]
  %v355 = vld [vmem:[%s4 + $0x28] sm:$0xff]
  %v356 = vld [vmem:[%s4 + $0x30] sm:$0xff]
  %v357 = vld [vmem:[%s4 + $0x38] sm:$0xff]
  %v358 = vld [vmem:[%s4 + $0x40] sm:$0xff]
  %v359 = vld [vmem:[%s4 + $0x48] sm:$0xff]
  %v360 = vmul.f32 %v30, %v31
  %v362 = vsel %vm52, %v350, 0
  %v365 = vsel %vm52, %v351, 0
  %v368 = vsel %vm52, %v352, 0
  %v371 = vsel %vm52, %v353, 0
  %v374 = vsel %vm52, %v354, 0
  %v377 = vsel %vm52, %v355, 0
  %v380 = vsel %vm52, %v356, 0
  %v383 = vsel %vm52, %v357, 0
  %v386 = vsel %vm52, %v358, 0
  %v389 = vsel %vm52, %v359, 0
  %v392 = vsel %vm83, %v360, 0
  %394 = vmatprep.subr.mxu0 0.0
  %395 = vmatpush1.msra.mxu0 %v392
  %396 = vmatprep.subr.mxu0 0.0
  %397 = vmatpush1.msra.mxu0 0.0
  %398 = vmatprep.subr.mxu0 0.0
  %399 = vmatpush1.msra.mxu0 0.0
  %400 = vmatprep.subr.mxu0 0.0
  %401 = vmatpush1.msra.mxu0 0.0
  %402 = vmatprep.subr.mxu0 0.0
  %403 = vmatpush1.msra.mxu0 0.0
  %404 = vmatprep.subr.mxu0 0.0
  %405 = vmatpush1.msra.mxu0 0.0
  %406 = vmatprep.subr.mxu0 0.0
  %407 = vmatpush1.msra.mxu0 0.0
  %408 = vmatprep.subr.mxu0 0.0
  %409 = vmatpush1.msra.mxu0 0.0
  %410 = vmatprep.subr.mxu0 0.0
  %411 = vmatpush1.msra.mxu0 0.0
  %412 = vmatprep.subr.mxu0 0.0
  %413 = vmatpush1.msra.mxu0 0.0
  %414 = vmatprep.subr.mxu0 0.0
  %415 = vmatpush1.msra.mxu0 0.0
  %416 = vmatprep.subr.mxu0 0.0
  %417 = vmatpush1.msra.mxu0 0.0
  %418 = vmatprep.subr.mxu0 0.0
  %419 = vmatpush1.msra.mxu0 0.0
  %420 = vmatprep.subr.mxu0 0.0
  %421 = vmatpush1.msra.mxu0 0.0
  %422 = vmatprep.subr.mxu0 0.0
  %423 = vmatpush1.msra.mxu0 0.0
  %424 = vmatprep.subr.mxu0 0.0
  %425 = vmatpush1.msra.mxu0 0.0
  %426 = vmatprep.subr.mxu0 0.0
  %427 = vmatpush1.msra.mxu0 0.0
  %428 = vmatprep.subr.mxu0 0.0
  %429 = vmatpush1.msra.mxu0 0.0
  %430 = vmatprep.subr.mxu0 0.0
  %431 = vmatpush1.msra.mxu0 0.0
  %432 = vmatprep.subr.mxu0 0.0
  %433 = vmatpush1.msra.mxu0 0.0
  %434 = vmatprep.subr.mxu0 0.0
  %435 = vmatpush1.msra.mxu0 0.0
  %436 = vmatprep.subr.mxu0 0.0
  %437 = vmatpush1.msra.mxu0 0.0
  %438 = vmatprep.subr.mxu0 0.0
  %439 = vmatpush1.msra.mxu0 0.0
  %440 = vmatprep.subr.mxu0 0.0
  %441 = vmatpush1.msra.mxu0 0.0
  %442 = vmatprep.subr.mxu0 0.0
  %443 = vmatpush1.msra.mxu0 0.0
  %444 = vmatprep.subr.mxu0 0.0
  %445 = vmatpush1.msra.mxu0 0.0
  %446 = vmatprep.subr.mxu0 0.0
  %447 = vmatpush1.msra.mxu0 0.0
  %448 = vmatprep.subr.mxu0 0.0
  %449 = vmatpush1.msra.mxu0 0.0
  %450 = vmatprep.subr.mxu0 0.0
  %451 = vmatpush1.msra.mxu0 0.0
  %452 = vmatprep.subr.mxu0 0.0
  %453 = vmatpush1.msra.mxu0 0.0
  %454 = vmatprep.subr.mxu0 0.0
  %455 = vmatpush1.msra.mxu0 0.0
  %456 = vmatprep.subr.mxu0 0.0
  %457 = vmatpush1.msra.mxu0 0.0
  %458 = vmatprep.mubr.f32.mxu0 0.0
  %459 = vmatmul.mubr.f32.gmra.mrb[0].mxu0 %v362
  %v460 = vpop.f32.mrb[0].mxu0
  %v461 = vadd.f32 0.0, %v460
  %v462 = vpop.f32.mrb[0].mxu0
  %463 = vmatprep.mubr.f32.mxu0 0.0
  %464 = vmatmul.mubr.f32.gmra.mrb[0].mxu0 %v365
  %v465 = vpop.f32.mrb[0].mxu0
  %v466 = vadd.f32 0.0, %v465
  %v467 = vpop.f32.mrb[0].mxu0
  %468 = vmatprep.mubr.f32.mxu0 0.0
  %469 = vmatmul.mubr.f32.gmra.mrb[0].mxu0 %v368
  %v470 = vpop.f32.mrb[0].mxu0
  %v471 = vadd.f32 0.0, %v470
  %v472 = vpop.f32.mrb[0].mxu0
  %473 = vmatprep.mubr.f32.mxu0 0.0
  %474 = vmatmul.mubr.f32.gmra.mrb[0].mxu0 %v371
  %v475 = vpop.f32.mrb[0].mxu0
  %v476 = vadd.f32 0.0, %v475
  %v477 = vpop.f32.mrb[0].mxu0
  %478 = vmatprep.mubr.f32.mxu0 0.0
  %479 = vmatmul.mubr.f32.gmra.mrb[0].mxu0 %v374
  %v480 = vpop.f32.mrb[0].mxu0
  %v481 = vadd.f32 0.0, %v480
  %v482 = vpop.f32.mrb[0].mxu0
  %483 = vmatprep.mubr.f32.mxu0 0.0
  %484 = vmatmul.mubr.f32.gmra.mrb[0].mxu0 %v377
  %v485 = vpop.f32.mrb[0].mxu0
  %v486 = vadd.f32 0.0, %v485
  %v487 = vpop.f32.mrb[0].mxu0
  %488 = vmatprep.mubr.f32.mxu0 0.0
  %489 = vmatmul.mubr.f32.gmra.mrb[0].mxu0 %v380
  %v490 = vpop.f32.mrb[0].mxu0
  %v491 = vadd.f32 0.0, %v490
  %v492 = vpop.f32.mrb[0].mxu0
  %493 = vmatprep.mubr.f32.mxu0 0.0
  %494 = vmatmul.mubr.f32.gmra.mrb[0].mxu0 %v383
  %v495 = vpop.f32.mrb[0].mxu0
  %v496 = vadd.f32 0.0, %v495
  %v497 = vpop.f32.mrb[0].mxu0
  %498 = vmatprep.mubr.f32.mxu0 0.0
  %499 = vmatmul.mubr.f32.gmra.mrb[0].mxu0 %v386
  %v500 = vpop.f32.mrb[0].mxu0
  %v501 = vadd.f32 0.0, %v500
  %v502 = vpop.f32.mrb[0].mxu0
  %503 = vmatprep.mubr.f32.mxu0 0.0
  %504 = vmatmul.mubr.f32.gmra.mrb[0].mxu0 %v389
  %v505 = vpop.f32.mrb[0].mxu0
  %v506 = vadd.f32 0.0, %v505
  %v507 = vpop.f32.mrb[0].mxu0
  %508 = vdwg.mxu0
  %v509 = vadd.f32 %v302, %v461
  %v510 = vadd.f32 %v307, %v466
  %v511 = vadd.f32 %v312, %v471
  %v512 = vadd.f32 %v317, %v476
  %v513 = vadd.f32 %v322, %v481
  %v514 = vadd.f32 %v327, %v486
  %v515 = vadd.f32 %v332, %v491
  %v516 = vadd.f32 %v337, %v496
  %v517 = vadd.f32 %v342, %v501
  %v518 = vadd.f32 %v347, %v506
  %v519 = vld [vmem:[%s5] sm:$0xff]
  %v520 = vld [vmem:[%s5 + $0x8] sm:$0xff]
  %v521 = vld [vmem:[%s5 + $0x10] sm:$0xff]
  %v522 = vld [vmem:[%s5 + $0x18] sm:$0xff]
  %v523 = vld [vmem:[%s5 + $0x20] sm:$0xff]
  %v524 = vld [vmem:[%s5 + $0x28] sm:$0xff]
  %v525 = vld [vmem:[%s5 + $0x30] sm:$0xff]
  %v526 = vld [vmem:[%s5 + $0x38] sm:$0xff]
  %v527 = vld [vmem:[%s5 + $0x40] sm:$0xff]
  %v528 = vld [vmem:[%s5 + $0x48] sm:$0xff]
  %530 = vset.pattern.permute.xlu0 0
  %531 = vperm.xlu0 %530, %v519
  %v532 = vpop.permute.xlu0 %531
  %535 = vset.pattern.permute.xlu0 0
  %536 = vperm.xlu0 %535, %v520
  %v537 = vpop.permute.xlu0 %536
  %540 = vset.pattern.permute.xlu0 0
  %541 = vperm.xlu0 %540, %v521
  %v542 = vpop.permute.xlu0 %541
  %545 = vset.pattern.permute.xlu0 0
  %546 = vperm.xlu0 %545, %v522
  %v547 = vpop.permute.xlu0 %546
  %550 = vset.pattern.permute.xlu0 0
  %551 = vperm.xlu0 %550, %v523
  %v552 = vpop.permute.xlu0 %551
  %555 = vset.pattern.permute.xlu0 0
  %556 = vperm.xlu0 %555, %v524
  %v557 = vpop.permute.xlu0 %556
  %560 = vset.pattern.permute.xlu0 0
  %561 = vperm.xlu0 %560, %v525
  %v562 = vpop.permute.xlu0 %561
  %565 = vset.pattern.permute.xlu0 0
  %566 = vperm.xlu0 %565, %v526
  %v567 = vpop.permute.xlu0 %566
  %570 = vset.pattern.permute.xlu0 0
  %571 = vperm.xlu0 %570, %v527
  %v572 = vpop.permute.xlu0 %571
  %575 = vset.pattern.permute.xlu0 0
  %576 = vperm.xlu0 %575, %v528
  %v577 = vpop.permute.xlu0 %576
  %v579 = vadd.f32 %v509, %v532
  %v580 = vadd.f32 %v510, %v537
  %v581 = vadd.f32 %v511, %v542
  %v582 = vadd.f32 %v512, %v547
  %v583 = vadd.f32 %v513, %v552
  %v584 = vadd.f32 %v514, %v557
  %v585 = vadd.f32 %v515, %v562
  %v586 = vadd.f32 %v516, %v567
  %v587 = vadd.f32 %v517, %v572
  %v588 = vadd.f32 %v518, %v577
  %v589 = vmax.f32 %v579, 0.0
  %v590 = vmax.f32 %v580, 0.0
  %v591 = vmax.f32 %v581, 0.0
  %v592 = vmax.f32 %v582, 0.0
  %v593 = vmax.f32 %v583, 0.0
  %v594 = vmax.f32 %v584, 0.0
  %v595 = vmax.f32 %v585, 0.0
  %v596 = vmax.f32 %v586, 0.0
  %v597 = vmax.f32 %v587, 0.0
  %v598 = vmax.f32 %v588, 0.0
  %v599 = vld [vmem:[%s6] sm:$0xff]
  %v600 = vld [vmem:[%s6 + $0x8] sm:$0xff]
  %v601 = vld [vmem:[%s6 + $0x10] sm:$0xff]
  %v602 = vld [vmem:[%s6 + $0x18] sm:$0xff]
  %v603 = vld [vmem:[%s6 + $0x20] sm:$0xff]
  %v604 = vld [vmem:[%s6 + $0x28] sm:$0xff]
  %v605 = vld [vmem:[%s6 + $0x30] sm:$0xff]
  %v606 = vld [vmem:[%s6 + $0x38] sm:$0xff]
  %v607 = vld [vmem:[%s6 + $0x40] sm:$0xff]
  %v608 = vld [vmem:[%s6 + $0x48] sm:$0xff]
  %610 = vset.pattern.permute.xlu0 0
  %611 = vperm.xlu0 %610, %v599
  %v612 = vpop.permute.xlu0 %611
  %615 = vset.pattern.permute.xlu0 0
  %616 = vperm.xlu0 %615, %v600
  %v617 = vpop.permute.xlu0 %616
  %620 = vset.pattern.permute.xlu0 0
  %621 = vperm.xlu0 %620, %v601
  %v622 = vpop.permute.xlu0 %621
  %625 = vset.pattern.permute.xlu0 0
  %626 = vperm.xlu0 %625, %v602
  %v627 = vpop.permute.xlu0 %626
  %630 = vset.pattern.permute.xlu0 0
  %631 = vperm.xlu0 %630, %v603
  %v632 = vpop.permute.xlu0 %631
  %635 = vset.pattern.permute.xlu0 0
  %636 = vperm.xlu0 %635, %v604
  %v637 = vpop.permute.xlu0 %636
  %640 = vset.pattern.permute.xlu0 0
  %641 = vperm.xlu0 %640, %v605
  %v642 = vpop.permute.xlu0 %641
  %645 = vset.pattern.permute.xlu0 0
  %646 = vperm.xlu0 %645, %v606
  %v647 = vpop.permute.xlu0 %646
  %650 = vset.pattern.permute.xlu0 0
  %651 = vperm.xlu0 %650, %v607
  %v652 = vpop.permute.xlu0 %651
  %655 = vset.pattern.permute.xlu0 0
  %656 = vperm.xlu0 %655, %v608
  %v657 = vpop.permute.xlu0 %656
  %v659 = vmul.f32 %v612, %v589
  %v660 = vmul.f32 %v617, %v590
  %v661 = vmul.f32 %v622, %v591
  %v662 = vmul.f32 %v627, %v592
  %v663 = vmul.f32 %v632, %v593
  %v664 = vmul.f32 %v637, %v594
  %v665 = vmul.f32 %v642, %v595
  %v666 = vmul.f32 %v647, %v596
  %v667 = vmul.f32 %v652, %v597
  %v668 = vmul.f32 %v657, %v598
  %vm669 = vcmask 261120
  %v670 = vsel %vm669, %v659, 0.0
  %v671 = vsel %vm669, %v660, 0.0
  %v672 = vadd.f32 %v670, %v671
  %v673 = vsel %vm669, %v661, 0.0
  %v674 = vadd.f32 %v672, %v673
  %v675 = vsel %vm669, %v662, 0.0
  %v676 = vadd.f32 %v674, %v675
  %v677 = vsel %vm669, %v663, 0.0
  %v678 = vadd.f32 %v676, %v677
  %v679 = vsel %vm669, %v664, 0.0
  %v680 = vadd.f32 %v678, %v679
  %v681 = vsel %vm669, %v665, 0.0
  %v682 = vadd.f32 %v680, %v681
  %v683 = vsel %vm669, %v666, 0.0
  %v684 = vadd.f32 %v682, %v683
  %v685 = vsel %vm669, %v667, 0.0
  %v686 = vadd.f32 %v684, %v685
  %v687 = vsel %vm669, %v668, 0.0
  %v688 = vadd.f32 %v686, %v687
  %v689 = vrot.slane %v688, 4
  %v690 = vadd.f32 %v688, %v689
  %v691 = vrot.slane %v690, 2
  %v692 = vadd.f32 %v690, %v691
  %v693 = vrot.slane %v692, 1
  %v694 = vadd.f32 %v692, %v693
  %s695 = sld [smem:[#allocation2]]
  %v696 = vstv %s695
  %v697 = vadd.f32 %v694, %v696
  %vm698 = vcmask 253952
  %699 = vst.msk [vmem:[%s8] sm:$0x1] %vm698, %v697
  // Predicated region
  $region34: #{local_activation_unit.1} parent=0 // pred_check
    _
  $region35: #{local_activation_unit.1} parent=0 // pred_check_branch
    %701 = sbr.rel (0) target = $region37
  $region36: #{local_activation_unit.1} parent=0 // pred_region
    _
  $region37: #{local_activation_unit.1} parent=0 // pred_fallthru
    _
  // Predicated region
  $region38: #{local_activation_unit.1} parent=0 // pred_check
    _
  $region39: #{local_activation_unit.1} parent=0 // pred_check_branch
    %703 = sbr.rel (0) target = $region41
  $region40: #{local_activation_unit.1} parent=0 // pred_region
    _
  $region41: #{local_activation_unit.1} parent=0 // pred_fallthru
    _

</llo_original>
